<compile_context>
chip_gen: v5e
topology: v5e:2x2
jax: 0.10.0
libtpu: 0.0.40
codegen_flags: <defaults>
</compile_context>

<pallas_src>
import functools

import jax
import jax.numpy as jnp
from jax.experimental import pallas as pl
from jax.experimental.pallas import tpu as pltpu


def _round_up(x: int, m: int) -> int:
    return ((x + m - 1) // m) * m


def _fused_embed_kernel(nf_ref, wn_ref, bn_ref, ef_ref, we_ref, be_ref,
                        node_out_ref, edge_out_ref):
    # Node linear: [node_tile, node_dim] @ [node_dim, embed_pad] + [1, embed_pad]
    node_acc = jnp.dot(nf_ref[...], wn_ref[...],
                       preferred_element_type=jnp.float32)
    node_out_ref[...] = (node_acc + bn_ref[...]).astype(node_out_ref.dtype)

    # Edge linear: [edge_tile, edge_dim] @ [edge_dim, embed_pad] + [1, embed_pad]
    edge_acc = jnp.dot(ef_ref[...], we_ref[...],
                       preferred_element_type=jnp.float32)
    edge_out_ref[...] = (edge_acc + be_ref[...]).astype(edge_out_ref.dtype)


@functools.partial(jax.jit, static_argnames=("row_tile", "compute_dtype"))
def momd_init_embedding(nf, ef, w_node, b_node, w_edge, b_edge,
                        *, row_tile: int = 256, compute_dtype=None):
    """Fused (node_emb, edge_emb) = (nf @ w_node + b_node, ef @ w_edge + b_edge)."""
    num_nodes, node_dim = nf.shape
    num_edges, edge_dim = ef.shape
    embed_dim = w_node.shape[1]
    assert w_node.shape == (node_dim, embed_dim)
    assert w_edge.shape == (edge_dim, embed_dim)

    out_dtype = nf.dtype

    # Optional bf16 MXU inputs (f32 accumulation & bias add kept inside kernel).
    if compute_dtype is not None:
        nf = nf.astype(compute_dtype)
        ef = ef.astype(compute_dtype)
        w_node = w_node.astype(compute_dtype)
        w_edge = w_edge.astype(compute_dtype)

    # Lane-dense output: pad embed dim to a multiple of 128.
    embed_pad = _round_up(embed_dim, 128)

    # One shared grid over the row axis; each array gets its own row tile so
    # neither nodes nor edges do redundant work when the counts differ.
    grid_n = max(pl.cdiv(num_nodes, row_tile), pl.cdiv(num_edges, row_tile), 1)
    node_tile = _round_up(max(pl.cdiv(num_nodes, grid_n), 1), 8)
    edge_tile = _round_up(max(pl.cdiv(num_edges, grid_n), 1), 8)
    nodes_pad = node_tile * grid_n
    edges_pad = edge_tile * grid_n

    nf_p = jnp.pad(nf, ((0, nodes_pad - num_nodes), (0, 0)))
    ef_p = jnp.pad(ef, ((0, edges_pad - num_edges), (0, 0)))
    wn_p = jnp.pad(w_node, ((0, 0), (0, embed_pad - embed_dim)))
    we_p = jnp.pad(w_edge, ((0, 0), (0, embed_pad - embed_dim)))
    bn_p = jnp.pad(b_node.reshape(1, embed_dim),
                   ((0, 0), (0, embed_pad - embed_dim)))
    be_p = jnp.pad(b_edge.reshape(1, embed_dim),
                   ((0, 0), (0, embed_pad - embed_dim)))

    in_bytes = sum(int(a.size) * a.dtype.itemsize
                   for a in (nf_p, wn_p, bn_p, ef_p, we_p, be_p))
    out_bytes = (nodes_pad + edges_pad) * embed_pad * jnp.dtype(out_dtype).itemsize
    cost = pl.CostEstimate(
        flops=2 * (num_nodes * node_dim + num_edges * edge_dim) * embed_dim,
        transcendentals=0,
        bytes_accessed=in_bytes + out_bytes,
    )

    node_out, edge_out = pl.pallas_call(
        _fused_embed_kernel,
        out_shape=(
            jax.ShapeDtypeStruct((nodes_pad, embed_pad), out_dtype),
            jax.ShapeDtypeStruct((edges_pad, embed_pad), out_dtype),
        ),
        grid=(grid_n,),
        in_specs=[
            # Row-tiled activations.
            pl.BlockSpec((node_tile, node_dim), lambda i: (i, 0)),
            # Weights / biases: full blocks, VMEM-resident across the grid.
            pl.BlockSpec((node_dim, embed_pad), lambda i: (0, 0)),
            pl.BlockSpec((1, embed_pad), lambda i: (0, 0)),
            pl.BlockSpec((edge_tile, edge_dim), lambda i: (i, 0)),
            pl.BlockSpec((edge_dim, embed_pad), lambda i: (0, 0)),
            pl.BlockSpec((1, embed_pad), lambda i: (0, 0)),
        ],
        out_specs=(
            pl.BlockSpec((node_tile, embed_pad), lambda i: (i, 0)),
            pl.BlockSpec((edge_tile, embed_pad), lambda i: (i, 0)),
        ),
        compiler_params=pltpu.CompilerParams(
            dimension_semantics=("parallel",),
        ),
        cost_estimate=cost,
    )(nf_p, wn_p, bn_p, ef_p, we_p, be_p)

    # Strip the row / lane padding.
    return (node_out[:num_nodes, :embed_dim],
            edge_out[:num_edges, :embed_dim])


class MOMDInitEmbeddingPallas:
    """JAX/Pallas equivalent of the PyTorch MOMDInitEmbedding module."""

    def __init__(self, node_dim: int, edge_dim: int, embed_dim: int, key):
        k1, k2, k3, k4 = jax.random.split(key, 4)
        # torch-style Linear init: U(-1/sqrt(fan_in), 1/sqrt(fan_in));
        # weights stored as [in_dim, embed_dim].
        node_scale = 1.0 / jnp.sqrt(jnp.float32(node_dim))
        edge_scale = 1.0 / jnp.sqrt(jnp.float32(edge_dim))
        self.w_node = jax.random.uniform(
            k1, (node_dim, embed_dim), jnp.float32, -node_scale, node_scale)
        self.b_node = jax.random.uniform(
            k2, (embed_dim,), jnp.float32, -node_scale, node_scale)
        self.w_edge = jax.random.uniform(
            k3, (edge_dim, embed_dim), jnp.float32, -edge_scale, edge_scale)
        self.b_edge = jax.random.uniform(
            k4, (embed_dim,), jnp.float32, -edge_scale, edge_scale)

    def __call__(self, nf, ef, *, row_tile: int = 256, compute_dtype=None):
        # For v6e/v7x production graphs, pass compute_dtype=jnp.bfloat16 to
        # halve HBM traffic (accumulation / bias add stay f32 in-kernel).
        return momd_init_embedding(
            nf, ef, self.w_node, self.b_node, self.w_edge, self.b_edge,
            row_tile=row_tile, compute_dtype=compute_dtype)


if __name__ == "__main__":
    key = jax.random.PRNGKey(0)
    k_params, k_nf, k_ef = jax.random.split(key, 3)

    node_dim, edge_dim, embed_dim = 8, 4, 32
    num_nodes, num_edges = 16, 24

    module = MOMDInitEmbeddingPallas(node_dim, edge_dim, embed_dim, k_params)

    nf = jax.random.normal(k_nf, (num_nodes, node_dim), jnp.float32)
    ef = jax.random.normal(k_ef, (num_edges, edge_dim), jnp.float32)

    node_emb, edge_emb = module(nf, ef)
    jax.block_until_ready((node_emb, edge_emb))

    # Reference check against plain JAX.
    node_ref = nf @ module.w_node + module.b_node
    edge_ref = ef @ module.w_edge + module.b_edge
    assert node_emb.shape == (num_nodes, embed_dim)
    assert edge_emb.shape == (num_edges, embed_dim)
    assert jnp.allclose(node_emb, node_ref, atol=1e-5, rtol=1e-5)
    assert jnp.allclose(edge_emb, edge_ref, atol=1e-5, rtol=1e-5)

    print("KERNEL_OK")
</pallas_src>

<mosaic_0001>
module attributes {stable_mosaic.version = 11 : i64} {
  func.func @_fused_embed_kernel(%arg0: i32, %arg1: memref<16x8xf32, #tpu.memory_space<vmem>>, %arg2: memref<8x128xf32, #tpu.memory_space<vmem>>, %arg3: memref<1x128xf32, #tpu.memory_space<vmem>>, %arg4: memref<24x4xf32, #tpu.memory_space<vmem>>, %arg5: memref<4x128xf32, #tpu.memory_space<vmem>>, %arg6: memref<1x128xf32, #tpu.memory_space<vmem>>, %arg7: memref<16x128xf32, #tpu.memory_space<vmem>>, %arg8: memref<24x128xf32, #tpu.memory_space<vmem>>) attributes {dimension_semantics = [#tpu.dimension_semantics<parallel>], iteration_bounds = array<i64: 1>, scalar_prefetch = 0 : i64, scratch_operands = 0 : i64, tpu.core_type = #tpu.core_type<tc>, window_params = [{transform_indices = @transform_0, window_bounds = array<i64: 16, 8>}, {pipeline_mode = #tpu.pipeline_mode<synchronous>, transform_indices = @transform_1, window_bounds = array<i64: 8, 128>}, {pipeline_mode = #tpu.pipeline_mode<synchronous>, transform_indices = @transform_2, window_bounds = array<i64: 1, 128>}, {transform_indices = @transform_3, window_bounds = array<i64: 24, 4>}, {pipeline_mode = #tpu.pipeline_mode<synchronous>, transform_indices = @transform_4, window_bounds = array<i64: 4, 128>}, {pipeline_mode = #tpu.pipeline_mode<synchronous>, transform_indices = @transform_5, window_bounds = array<i64: 1, 128>}, {transform_indices = @transform_6, window_bounds = array<i64: 16, 128>}, {transform_indices = @transform_7, window_bounds = array<i64: 24, 128>}]} {
    %c0 = arith.constant 0 : index
    %c0_0 = arith.constant 0 : index
    %0 = vector.load %arg1[%c0, %c0_0] : memref<16x8xf32, #tpu.memory_space<vmem>>, vector<16x8xf32>
    %c0_1 = arith.constant 0 : index
    %c0_2 = arith.constant 0 : index
    %1 = vector.load %arg2[%c0_1, %c0_2] : memref<8x128xf32, #tpu.memory_space<vmem>>, vector<8x128xf32>
    %cst = arith.constant dense<0.000000e+00> : vector<16x128xf32>
    %2 = tpu.matmul %0, %1, %cst {dimension_numbers = #tpu.dot_dimension_numbers<[1], [0], [0], [1], [0, 0, 1, 1], [], []>} : vector<16x8xf32>, vector<8x128xf32>, vector<16x128xf32> -> vector<16x128xf32>
    %c0_3 = arith.constant 0 : index
    %c0_4 = arith.constant 0 : index
    %3 = vector.load %arg3[%c0_3, %c0_4] : memref<1x128xf32, #tpu.memory_space<vmem>>, vector<1x128xf32>
    %4 = vector.broadcast %3 : vector<1x128xf32> to vector<16x128xf32>
    %5 = arith.addf %2, %4 : vector<16x128xf32>
    %c0_5 = arith.constant 0 : index
    %c0_6 = arith.constant 0 : index
    %6 = vector.load %arg7[%c0_5, %c0_6] : memref<16x128xf32, #tpu.memory_space<vmem>>, vector<16x128xf32>
    tpu.vector_store %arg7[%c0_5, %c0_6], %5 {strides = array<i32>} : memref<16x128xf32, #tpu.memory_space<vmem>>, vector<16x128xf32>,
    %c0_7 = arith.constant 0 : index
    %c0_8 = arith.constant 0 : index
    %7 = vector.load %arg4[%c0_7, %c0_8] : memref<24x4xf32, #tpu.memory_space<vmem>>, vector<24x4xf32>
    %c0_9 = arith.constant 0 : index
    %c0_10 = arith.constant 0 : index
    %8 = vector.load %arg5[%c0_9, %c0_10] : memref<4x128xf32, #tpu.memory_space<vmem>>, vector<4x128xf32>
    %cst_11 = arith.constant dense<0.000000e+00> : vector<24x128xf32>
    %9 = tpu.matmul %7, %8, %cst_11 {dimension_numbers = #tpu.dot_dimension_numbers<[1], [0], [0], [1], [0, 0, 1, 1], [], []>} : vector<24x4xf32>, vector<4x128xf32>, vector<24x128xf32> -> vector<24x128xf32>
    %c0_12 = arith.constant 0 : index
    %c0_13 = arith.constant 0 : index
    %10 = vector.load %arg6[%c0_12, %c0_13] : memref<1x128xf32, #tpu.memory_space<vmem>>, vector<1x128xf32>
    %11 = vector.broadcast %10 : vector<1x128xf32> to vector<24x128xf32>
    %12 = arith.addf %9, %11 : vector<24x128xf32>
    %c0_14 = arith.constant 0 : index
    %c0_15 = arith.constant 0 : index
    %13 = vector.load %arg8[%c0_14, %c0_15] : memref<24x128xf32, #tpu.memory_space<vmem>>, vector<24x128xf32>
    tpu.vector_store %arg8[%c0_14, %c0_15], %12 {strides = array<i32>} : memref<24x128xf32, #tpu.memory_space<vmem>>, vector<24x128xf32>,
    return
  }
  func.func @transform_0(%arg0: i32) -> (i32, i32) {
    %c0_i32 = arith.constant 0 : i32
    %c0_i32_0 = arith.constant 0 : i32
    return %arg0, %c0_i32 : i32, i32
  }
  func.func @transform_1(%arg0: i32) -> (i32, i32) {
    %c0_i32 = arith.constant 0 : i32
    %c0_i32_0 = arith.constant 0 : i32
    %c0_i32_1 = arith.constant 0 : i32
    return %c0_i32, %c0_i32_0 : i32, i32
  }
  func.func @transform_2(%arg0: i32) -> (i32, i32) {
    %c0_i32 = arith.constant 0 : i32
    %c0_i32_0 = arith.constant 0 : i32
    %c0_i32_1 = arith.constant 0 : i32
    return %c0_i32, %c0_i32_0 : i32, i32
  }
  func.func @transform_3(%arg0: i32) -> (i32, i32) {
    %c0_i32 = arith.constant 0 : i32
    %c0_i32_0 = arith.constant 0 : i32
    return %arg0, %c0_i32 : i32, i32
  }
  func.func @transform_4(%arg0: i32) -> (i32, i32) {
    %c0_i32 = arith.constant 0 : i32
    %c0_i32_0 = arith.constant 0 : i32
    %c0_i32_1 = arith.constant 0 : i32
    return %c0_i32, %c0_i32_0 : i32, i32
  }
  func.func @transform_5(%arg0: i32) -> (i32, i32) {
    %c0_i32 = arith.constant 0 : i32
    %c0_i32_0 = arith.constant 0 : i32
    %c0_i32_1 = arith.constant 0 : i32
    return %c0_i32, %c0_i32_0 : i32, i32
  }
  func.func @transform_6(%arg0: i32) -> (i32, i32) {
    %c0_i32 = arith.constant 0 : i32
    %c0_i32_0 = arith.constant 0 : i32
    return %arg0, %c0_i32 : i32, i32
  }
  func.func @transform_7(%arg0: i32) -> (i32, i32) {
    %c0_i32 = arith.constant 0 : i32
    %c0_i32_0 = arith.constant 0 : i32
    return %arg0, %c0_i32 : i32, i32
  }
}

</mosaic_0001>

<llo_original>
// kernel: momd_init_embedding.1
$region0: #{momd_init_embedding.1}
  #allocation0 [shape = 'u32[]', space=smem, size = 0x4, offset = 0x4, fixed_abs, tag = 'smem constant byte address 0x4 - core index']
  #allocation1 [shape = 'u32[72,128]{1,0:T(1,128)}', space=vmem, size = 0x9000, scoped, tag = 'internal scratch']
  %s0 = inlined_call_operand.vmem [shape: f32[16,8], index: 0, kind: input, shape index: {}]
  %s1 = inlined_call_operand.vmem [shape: f32[8,128], index: 1, kind: input, shape index: {}]
  %s2 = inlined_call_operand.vmem [shape: f32[1,128], index: 2, kind: input, shape index: {}]
  %s3 = inlined_call_operand.vmem [shape: f32[24,4], index: 3, kind: input, shape index: {}]
  %s4 = inlined_call_operand.vmem [shape: f32[4,128], index: 4, kind: input, shape index: {}]
  %s5 = inlined_call_operand.vmem [shape: f32[1,128], index: 5, kind: input, shape index: {}]
  %s6 = inlined_call_operand.hbm [shape: f32[16,128], index: 6, kind: output, shape index: {0}]
  %s7 = inlined_call_operand.hbm [shape: f32[24,128], index: 7, kind: output, shape index: {1}]
  %8 = xla_tuple %s6, %s7
  %s9 = sld [smem:[#allocation0]]
  $region42: #{momd_init_embedding.1} parent=0
    _
  %s11 = ssub.s32 1, %s9
  %s12 = scalar_select 0, %s11, %s9
  $region1: #{momd_init_embedding.1} parent=0
    #allocation2 [shape = 'u8[8192]{0}', space=vmem, size = 0x2000, scoped, tag = 'output window, operand 0, single buffered']
    #allocation3 [shape = 's32[1]{0}', space=sflag, size = 0x4, scoped, tag = 'scoped memory for momd_init_embedding.1']
    #allocation4 [shape = 'u8[12288]{0}', space=vmem, size = 0x3000, scoped, tag = 'output window, operand 1, single buffered']
    #allocation5 [shape = 's32[1]{0}', space=sflag, size = 0x4, scoped, tag = 'scoped memory for momd_init_embedding.1']
    %13 = vsyncpa [#allocation3], 0
    %14 = vsyncpa [#allocation5], 0
    // Predicated region
    $region2: #{momd_init_embedding.1} parent=1 // pred_check
      _
    $region3: #{momd_init_embedding.1} parent=1 // pred_check_branch
      %16 = sbr.rel (0) target = $region5
    $region4: #{momd_init_embedding.1} parent=1 // pred_region
      _
    $region5: #{momd_init_embedding.1} parent=1 // pred_fallthru
      _
    // Predicated region
    $region6: #{momd_init_embedding.1} parent=1 // pred_check
      _
    $region7: #{momd_init_embedding.1} parent=1 // pred_check_branch
      %18 = sbr.rel (0) target = $region9
    $region8: #{momd_init_embedding.1} parent=1 // pred_region
      _
    $region9: #{momd_init_embedding.1} parent=1 // pred_fallthru
      _
    // Predicated region
    $region10: #{momd_init_embedding.1} parent=1 // pred_check
      _
    $region11: #{momd_init_embedding.1} parent=1 // pred_check_branch
      %20 = sbr.rel (0) target = $region13
    $region12: #{momd_init_embedding.1} parent=1 // pred_region
      _
    $region13: #{momd_init_embedding.1} parent=1 // pred_fallthru
      _
    // Predicated region
    $region14: #{momd_init_embedding.1} parent=1 // pred_check
      _
    $region15: #{momd_init_embedding.1} parent=1 // pred_check_branch
      %22 = sbr.rel (0) target = $region17
    $region16: #{momd_init_embedding.1} parent=1 // pred_region
      _
    $region17: #{momd_init_embedding.1} parent=1 // pred_fallthru
      _
    // Predicated region
    $region18: #{momd_init_embedding.1} parent=1 // pred_check
      _
    $region19: #{momd_init_embedding.1} parent=1 // pred_check_branch
      %24 = sbr.rel (0) target = $region21
    $region20: #{momd_init_embedding.1} parent=1 // pred_region
      _
    $region21: #{momd_init_embedding.1} parent=1 // pred_fallthru
      _
    // Predicated region
    $region22: #{momd_init_embedding.1} parent=1 // pred_check
      _
    $region23: #{momd_init_embedding.1} parent=1 // pred_check_branch
      %26 = sbr.rel (0) target = $region25
    $region24: #{momd_init_embedding.1} parent=1 // pred_region
      _
    $region25: #{momd_init_embedding.1} parent=1 // pred_fallthru
      _
    %v27 = vld [vmem:[%s0] sm:$0xff]
    %v28 = vld [vmem:[%s0 + $0x8] sm:$0xff]
    %v29 = vld [vmem:[%s1] sm:$0xff]
    %v30 = vld [vmem:[%s2] sm:$0x1]
    %v32 = vperm.slane %v30, 0
    %vm34 = vcmask 64512
    %v36 = vsel %vm34, %v27, 0
    %v39 = vsel %vm34, %v28, 0
    %41 = vmatpush.msra.mxu0 0.0
    %42 = vmatpush.msra.mxu0 0.0
    %43 = vmatpush.msra.mxu0 0.0
    %44 = vmatpush.msra.mxu0 0.0
    %45 = vmatpush.msra.mxu0 0.0
    %46 = vmatpush.msra.mxu0 0.0
    %47 = vmatpush.msra.mxu0 0.0
    %48 = vmatpush.msra.mxu0 0.0
    %49 = vmatpush.msra.mxu0 0.0
    %50 = vmatpush.msra.mxu0 0.0
    %51 = vmatpush.msra.mxu0 0.0
    %52 = vmatpush.msra.mxu0 0.0
    %53 = vmatpush.msra.mxu0 0.0
    %54 = vmatpush.msra.mxu0 0.0
    %55 = vmatpush.msra.mxu0 0.0
    %56 = vmatpush.msra.mxu0 %v29
    %57 = vmatmul.f32.gmra.mxu0 %v36
    %v58 = vpop.f32.mrf.mxu0
    %v59 = vadd.f32 %v32, %v58
    %60 = vmatmul.f32.gmra.mxu0 %v39
    %v61 = vpop.f32.mrf.mxu0
    %v62 = vadd.f32 %v32, %v61
    %63 = vdwg.mxu0
    %64 = vst [vmem:[#allocation2] sm:$0xff] %v59
    %65 = vst [vmem:[#allocation2 + $0x8] sm:$0xff] %v62
    %v66 = vld [vmem:[%s3] sm:$0xff]
    %v67 = vld [vmem:[%s3 + $0x8] sm:$0xff]
    %v68 = vld [vmem:[%s3 + $0x10] sm:$0xff]
    %v69 = vld [vmem:[%s4] sm:$0xf]
    %v70 = vld [vmem:[%s5] sm:$0x1]
    %v72 = vperm.slane %v70, 0
    %vm74 = vcmask 31744
    %v76 = vsel %vm74, %v66, 0
    %v79 = vsel %vm74, %v67, 0
    %v82 = vsel %vm74, %v68, 0
    %vm84 = vcmask 1043456
    %v86 = vsel %vm84, %v69, 0
    %88 = vmatpush.msra.mxu0 0.0
    %89 = vmatpush.msra.mxu0 0.0
    %90 = vmatpush.msra.mxu0 0.0
    %91 = vmatpush.msra.mxu0 0.0
    %92 = vmatpush.msra.mxu0 0.0
    %93 = vmatpush.msra.mxu0 0.0
    %94 = vmatpush.msra.mxu0 0.0
    %95 = vmatpush.msra.mxu0 0.0
    %96 = vmatpush.msra.mxu0 0.0
    %97 = vmatpush.msra.mxu0 0.0
    %98 = vmatpush.msra.mxu0 0.0
    %99 = vmatpush.msra.mxu0 0.0
    %100 = vmatpush.msra.mxu0 0.0
    %101 = vmatpush.msra.mxu0 0.0
    %102 = vmatpush.msra.mxu0 0.0
    %103 = vmatpush.msra.mxu0 %v86
    %104 = vmatmul.f32.gmra.mxu0 %v76
    %v105 = vpop.f32.mrf.mxu0
    %v106 = vadd.f32 %v72, %v105
    %107 = vmatmul.f32.gmra.mxu0 %v79
    %v108 = vpop.f32.mrf.mxu0
    %v109 = vadd.f32 %v72, %v108
    %110 = vmatmul.f32.gmra.mxu0 %v82
    %v111 = vpop.f32.mrf.mxu0
    %v112 = vadd.f32 %v72, %v111
    %113 = vdwg.mxu0
    %114 = vst [vmem:[#allocation4] sm:$0xff] %v106
    %115 = vst [vmem:[#allocation4 + $0x8] sm:$0xff] %v109
    %116 = vst [vmem:[#allocation4 + $0x10] sm:$0xff] %v112
    // Predicated region
    $region26: #{momd_init_embedding.1} parent=1 // pred_check
      _
    $region27: #{momd_init_embedding.1} parent=1 // pred_check_branch
      %118 = sbr.rel (0) target = $region29
    $region28: #{momd_init_embedding.1} parent=1 // pred_region
      %120 = vsyncadd [#allocation3], 0
      %s121 = sshll.u32 [#allocation2], 4
      %s122 = int_to_ptr.vmem [resolvable:$true] %s121
      %s123 = sshll.u32 %s6, 4
      %s124 = int_to_ptr.hbm [resolvable:$true] %s123
      %129 = dma.vmem_to_hbm [thread:$0]  %s122, 256, %s124, [#allocation3], 128, 128, 8
    $region29: #{momd_init_embedding.1} parent=1 // pred_fallthru
      _
    // Predicated region
    $region30: #{momd_init_embedding.1} parent=1 // pred_check
      _
    $region31: #{momd_init_embedding.1} parent=1 // pred_check_branch
      %131 = sbr.rel (0) target = $region33
    $region32: #{momd_init_embedding.1} parent=1 // pred_region
      %133 = vsyncadd [#allocation5], 0
      %s134 = sshll.u32 [#allocation4], 4
      %s135 = int_to_ptr.vmem [resolvable:$true] %s134
      %s136 = sshll.u32 %s7, 4
      %s137 = int_to_ptr.hbm [resolvable:$true] %s136
      %142 = dma.vmem_to_hbm [thread:$0]  %s135, 384, %s137, [#allocation5], 128, 128, 8
    $region33: #{momd_init_embedding.1} parent=1 // pred_fallthru
      _
    // Predicated region
    $region34: #{momd_init_embedding.1} parent=1 // pred_check
      _
    $region35: #{momd_init_embedding.1} parent=1 // pred_check_branch
      %144 = sbr.rel (0) target = $region37
    $region36: #{momd_init_embedding.1} parent=1 // pred_region
      %146 = dma.done [#allocation3], 256
    $region37: #{momd_init_embedding.1} parent=1 // pred_fallthru
      _
    // Predicated region
    $region38: #{momd_init_embedding.1} parent=1 // pred_check
      _
    $region39: #{momd_init_embedding.1} parent=1 // pred_check_branch
      %148 = sbr.rel (0) target = $region41
    $region40: #{momd_init_embedding.1} parent=1 // pred_region
      %150 = dma.done [#allocation5], 384
    $region41: #{momd_init_embedding.1} parent=1 // pred_fallthru
      _
    %151 = vsyncpa [#allocation3], 1
    %152 = vsyncpa [#allocation5], 1

</llo_original>
